<compile_context>
chip_gen: v5e
topology: v5e:2x2
jax: 0.10.0
libtpu: 0.0.40
codegen_flags: <defaults>
</compile_context>

<pallas_src>
import functools
import math

import jax
import jax.numpy as jnp
from jax.experimental import pallas as pl
from jax.experimental.pallas import tpu as pltpu

LANE = 128        # samples per packed row (vreg lane width)
ROW_BLOCK = 512   # packed rows per grid step for large batches (512*128 samples)


def _uniform_categorical_kernel(bits_ref, actions_ref, *, output_dim):
    """Map uniform uint32 bits -> uniform categorical samples in [0, output_dim)."""
    ubits = bits_ref[...]
    if output_dim & (output_dim - 1) == 0:
        # K is a power of two: the low bits of a uniform u32 are uniform in [0, K).
        actions_ref[...] = (ubits & jnp.uint32(output_dim - 1)).astype(jnp.int32)
    else:
        # General K: top 24 bits -> uniform float in [0, 1), then floor(u * K).
        # (Tiny modulo-style bias when K does not divide 2^24; negligible for small K.
        #  The min() clamp guards the u*K == K float-rounding edge case.)
        u = (ubits >> jnp.uint32(8)).astype(jnp.float32) * jnp.float32(1.0 / (1 << 24))
        a = jnp.floor(u * jnp.float32(output_dim))
        actions_ref[...] = jnp.minimum(a, jnp.float32(output_dim - 1)).astype(jnp.int32)


def random_policy_forward(state, key, output_dim=2):
    """Pallas implementation of RandomPolicy.forward.

    Args:
      state: (B, ...) array; only the (static) batch dimension B is used,
             exactly as in the PyTorch module.
      key:   jax.random key for this call (stands in for torch's global RNG;
             pass a fresh key per step to advance the stream).
      output_dim: number of discrete actions K.

    Returns:
      actions:   (B,) int32 in [0, output_dim)
      log_probs: (B,) float32, all equal to log(1/output_dim)
    """
    B = state.shape[0]

    # Pack B samples lane-dense into (rows, LANE); pad rows up to the (8, 128)
    # tiling, and (for large B) to a multiple of ROW_BLOCK so the grid divides.
    rows = -(-B // LANE)                      # ceil(B / 128)
    rows = max(8, -(-rows // 8) * 8)          # multiple of 8 sublanes
    if rows > ROW_BLOCK:
        rows = -(-rows // ROW_BLOCK) * ROW_BLOCK
        block_rows = ROW_BLOCK
    else:
        block_rows = rows
    grid = (rows // block_rows,)

    # TODO(synk): on real TPU hardware the bits could be drawn in-kernel with
    # pltpu.prng_seed / pltpu.prng_random_bits; host-side jax.random.bits keeps
    # the kernel portable to interpret mode (where those primitives don't lower).
    bits = jax.random.bits(key, (rows, LANE), dtype=jnp.uint32)

    kernel = functools.partial(_uniform_categorical_kernel, output_dim=output_dim)
    actions_packed = pl.pallas_call(
        kernel,
        out_shape=jax.ShapeDtypeStruct((rows, LANE), jnp.int32),
        grid=grid,
        in_specs=[pl.BlockSpec((block_rows, LANE), lambda i: (i, 0))],
        out_specs=pl.BlockSpec((block_rows, LANE), lambda i: (i, 0)),
        compiler_params=pltpu.CompilerParams(
            dimension_semantics=("parallel",)),  # v7x: split row-blocks across 2 TCs
    )(bits)

    # Flatten the lane-dense slab and keep the first B samples (contiguous slice).
    actions = actions_packed.reshape(-1)[:B]

    # log_prob of any action under the uniform categorical is the constant -log(K);
    # emit it host-side so the kernel writes half as many bytes.
    log_probs = jnp.full((B,), -math.log(output_dim), jnp.float32)
    return actions, log_probs


if __name__ == "__main__":
    key = jax.random.PRNGKey(0)
    k_state, k_sample_a, k_sample_b = jax.random.split(key, 3)

    batch, feat = 2, 4
    state = jax.random.normal(k_state, (batch, feat), dtype=jnp.float32)

    # Default power-of-two action space (K = 2): bitwise-AND path.
    actions, log_probs = random_policy_forward(state, k_sample_a, output_dim=2)
    jax.block_until_ready((actions, log_probs))
    assert actions.shape == (batch,) and actions.dtype == jnp.int32
    assert log_probs.shape == (batch,) and log_probs.dtype == jnp.float32
    assert bool(jnp.all((actions >= 0) & (actions < 2)))
    assert bool(jnp.allclose(log_probs, -jnp.log(2.0)))

    # Non-power-of-two action space (K = 3): float conversion path.
    actions3, log_probs3 = random_policy_forward(state, k_sample_b, output_dim=3)
    jax.block_until_ready((actions3, log_probs3))
    assert actions3.shape == (batch,) and actions3.dtype == jnp.int32
    assert bool(jnp.all((actions3 >= 0) & (actions3 < 3)))
    assert bool(jnp.allclose(log_probs3, -jnp.log(3.0)))

    print("KERNEL_OK")
</pallas_src>

<mosaic_0001>
module attributes {stable_mosaic.version = 11 : i64} {
  func.func @_uniform_categorical_kernel(%arg0: i32, %arg1: memref<8x128xi32, #tpu.memory_space<vmem>>, %arg2: memref<8x128xi32, #tpu.memory_space<vmem>>) attributes {dimension_semantics = [#tpu.dimension_semantics<parallel>], iteration_bounds = array<i64: 1>, scalar_prefetch = 0 : i64, scratch_operands = 0 : i64, tpu.core_type = #tpu.core_type<tc>, window_params = [{transform_indices = @transform_0, window_bounds = array<i64: 8, 128>}, {transform_indices = @transform_1, window_bounds = array<i64: 8, 128>}]} {
    %c0 = arith.constant 0 : index
    %c0_0 = arith.constant 0 : index
    %0 = vector.load %arg1[%c0, %c0_0] : memref<8x128xi32, #tpu.memory_space<vmem>>, vector<8x128xi32>
    %c1_i32 = arith.constant 1 : i32
    %1 = vector.broadcast %c1_i32 : i32 to vector<8x128xi32>
    %2 = arith.andi %0, %1 : vector<8x128xi32>
    %c0_1 = arith.constant 0 : index
    %c0_2 = arith.constant 0 : index
    %3 = vector.load %arg2[%c0_1, %c0_2] : memref<8x128xi32, #tpu.memory_space<vmem>>, vector<8x128xi32>
    tpu.vector_store %arg2[%c0_1, %c0_2], %2 {strides = array<i32>} : memref<8x128xi32, #tpu.memory_space<vmem>>, vector<8x128xi32>,
    return
  }
  func.func @transform_0(%arg0: i32) -> (i32, i32) {
    %c0_i32 = arith.constant 0 : i32
    %c0_i32_0 = arith.constant 0 : i32
    return %arg0, %c0_i32 : i32, i32
  }
  func.func @transform_1(%arg0: i32) -> (i32, i32) {
    %c0_i32 = arith.constant 0 : i32
    %c0_i32_0 = arith.constant 0 : i32
    return %arg0, %c0_i32 : i32, i32
  }
}

</mosaic_0001>

<llo_original>
// kernel: tpu_custom_call.1
$region0: #{tpu_custom_call.1}
  #allocation0 [shape = 'u32[]', space=smem, size = 0x4, offset = 0x4, fixed_abs, tag = 'smem constant byte address 0x4 - core index']
  #allocation1 [shape = 'u32[72,128]{1,0:T(1,128)}', space=vmem, size = 0x9000, scoped, tag = 'internal scratch']
  %s0 = inlined_call_operand.hbm [shape: u32[8,128], index: 0, kind: input, shape index: {}]
  %s1 = inlined_call_operand.hbm [shape: s32[8,128], index: 1, kind: output, shape index: {}]
  %s2 = sld [smem:[#allocation0]]
  $region18: #{tpu_custom_call.1} parent=0
    _
  %s4 = ssub.s32 1, %s2
  %s5 = scalar_select 0, %s4, %s2
  $region1: #{tpu_custom_call.1} parent=0
    #allocation2 [shape = 'u8[4096]{0}', space=vmem, size = 0x1000, scoped, tag = 'input window, operand 0, single buffered']
    #allocation3 [shape = 's32[1]{0}', space=sflag, size = 0x4, scoped, tag = 'scoped memory for tpu_custom_call.1']
    #allocation4 [shape = 's32[1]{0}', space=sflag, size = 0x4, scoped, tag = 'scoped memory for tpu_custom_call.1']
    #allocation5 [shape = 'u8[4096]{0}', space=vmem, size = 0x1000, scoped, tag = 'output window, operand 0, single buffered']
    %6 = vsyncpa [#allocation3], 0
    %7 = vsyncpa [#allocation4], 0
    // Predicated region
    $region2: #{tpu_custom_call.1} parent=1 // pred_check
      _
    $region3: #{tpu_custom_call.1} parent=1 // pred_check_branch
      %9 = sbr.rel (0) target = $region5
    $region4: #{tpu_custom_call.1} parent=1 // pred_region
      %11 = vsyncadd [#allocation3], 0
      %s13 = sshll.u32 %s0, 4
      %s14 = int_to_ptr.hbm [resolvable:$true] %s13
      %s15 = sshll.u32 [#allocation2], 4
      %s16 = int_to_ptr.vmem [resolvable:$true] %s15
      %18 = dma.hbm_to_vmem [thread:$0]  %s14, 128, %s16, [#allocation3]
    $region5: #{tpu_custom_call.1} parent=1 // pred_fallthru
      _
    // Predicated region
    $region6: #{tpu_custom_call.1} parent=1 // pred_check
      _
    $region7: #{tpu_custom_call.1} parent=1 // pred_check_branch
      %20 = sbr.rel (0) target = $region9
    $region8: #{tpu_custom_call.1} parent=1 // pred_region
      %22 = dma.done [#allocation3], 128
    $region9: #{tpu_custom_call.1} parent=1 // pred_fallthru
      _
    %v23 = vld [vmem:[#allocation2] sm:$0xff]
    %v24 = vand.u32 %v23, 1
    %25 = vst [vmem:[#allocation5] sm:$0xff] %v24
    // Predicated region
    $region10: #{tpu_custom_call.1} parent=1 // pred_check
      _
    $region11: #{tpu_custom_call.1} parent=1 // pred_check_branch
      %27 = sbr.rel (0) target = $region13
    $region12: #{tpu_custom_call.1} parent=1 // pred_region
      %29 = vsyncadd [#allocation4], 0
      %s31 = sshll.u32 [#allocation5], 4
      %s32 = int_to_ptr.vmem [resolvable:$true] %s31
      %s33 = sshll.u32 %s1, 4
      %s34 = int_to_ptr.hbm [resolvable:$true] %s33
      %36 = dma.vmem_to_hbm [thread:$0]  %s32, 128, %s34, [#allocation4]
    $region13: #{tpu_custom_call.1} parent=1 // pred_fallthru
      _
    // Predicated region
    $region14: #{tpu_custom_call.1} parent=1 // pred_check
      _
    $region15: #{tpu_custom_call.1} parent=1 // pred_check_branch
      %38 = sbr.rel (0) target = $region17
    $region16: #{tpu_custom_call.1} parent=1 // pred_region
      %40 = dma.done [#allocation4], 128
    $region17: #{tpu_custom_call.1} parent=1 // pred_fallthru
      _
    %41 = vsyncpa [#allocation3], 1
    %42 = vsyncpa [#allocation4], 1

</llo_original>
